<compile_context>
chip_gen: v7x
topology: tpu7x:2x2x1
jax: 0.10.0
libtpu: 0.0.40
codegen_flags: <defaults>
</compile_context>

<pallas_src>
import functools

import jax
import jax.numpy as jnp
from jax.experimental import pallas as pl
from jax.experimental.pallas import tpu as pltpu

LN_EPS = 1e-5  # module default


def _round_up(x, m):
    return ((x + m - 1) // m) * m


def _choose_bm(B, row_bytes, sublane, *, target_block_bytes=2 << 20,
               min_block_bytes=512 << 10, target_steps=4, block_batch_cap=1024):
    """Pick the batch-tile height (rows per grid step)."""
    if B <= sublane:
        # Block rows == full array dim (legal BlockSpec), single grid step.
        return max(int(B), 1)
    # Largest bm whose x block stays under target_block_bytes (1-4 MiB sweet spot).
    bm_max = max(sublane, (target_block_bytes // row_bytes) // sublane * sublane)
    # Smallest bm that still gives a reasonably sized (>= ~512 KiB) block.
    bm_min = _round_up(max(1, -(-min_block_bytes // row_bytes)), sublane)
    bm_min = min(max(bm_min, sublane), bm_max)
    # Aim for >= target_steps grid steps so pipelining / megacore have work.
    bm_steps = _round_up(pl.cdiv(B, target_steps), sublane)
    bm = max(bm_min, min(bm_steps, bm_max))
    bm = min(bm, int(block_batch_cap))
    # Keep every block start in-bounds (only the last block may be ragged).
    bm = min(bm, (B // sublane) * sublane)
    return max(bm, sublane)


def _layernorm_kernel(x_ref, g_ref, b_ref, o_ref, *, n_feat, n_pad, eps):
    """x_ref: (bm, Np) rows; g_ref/b_ref: (1, Np) per-feature affine; o_ref: (bm, Np)."""
    x = x_ref[...].astype(jnp.float32)
    n = float(n_feat)

    # Pass 1: mean. (Zero-padded feature columns contribute 0 to the sum.)
    mu = jnp.sum(x, axis=-1, keepdims=True) * (1.0 / n)

    # Pass 2: centered variance — numerically robust; data is already in VMEM
    # so the second reduction is hidden under the HBM roofline.
    d = x - mu
    if n_pad != n_feat:
        col = jax.lax.broadcasted_iota(jnp.int32, x.shape, dimension=x.ndim - 1)
        d = jnp.where(col < n_feat, d, 0.0)
    var = jnp.sum(d * d, axis=-1, keepdims=True) * (1.0 / (n - 1.0))
    std = jnp.sqrt(var)

    y = d * (1.0 / (std + eps))                  # eps added to std (module semantics)
    y = y * g_ref[...] + b_ref[...]              # per-feature affine (pre-expanded)
    o_ref[...] = y.astype(o_ref.dtype)


def layer_norm_forward(x, gamma, beta, *, eps=LN_EPS, block_batch=1024,
                       target_block_bytes=2 << 20):
    """x: (B, C, *spatial) or (B, C); gamma/beta: (C,). Returns same shape as x."""
    orig_shape = x.shape
    B = int(orig_shape[0])
    C = int(orig_shape[1])
    S = 1
    for d in orig_shape[2:]:
        S *= int(d)
    N = C * S
    Np = _round_up(N, 128)  # lane-dense feature width

    # Flatten to lane-dense rows; expand per-channel affine to per-feature rows
    # (plain-JAX glue, done once outside the kernel).
    x2 = x.reshape(B, N)
    g_full = jnp.repeat(gamma.astype(jnp.float32), S).reshape(1, N)
    b_full = jnp.repeat(beta.astype(jnp.float32), S).reshape(1, N)
    if Np != N:
        # Lane-pad the feature dim so output stores are unmasked full-lane vst slabs.
        x2 = jnp.pad(x2, ((0, 0), (0, Np - N)))
        g_full = jnp.pad(g_full, ((0, 0), (0, Np - N)))
        b_full = jnp.pad(b_full, ((0, 0), (0, Np - N)))

    itemsize = jnp.dtype(x.dtype).itemsize
    sublane = {4: 8, 2: 16, 1: 32}.get(itemsize, 8)  # dtype-aware sublane packing
    row_bytes = Np * itemsize
    bm = _choose_bm(B, row_bytes, sublane,
                    target_block_bytes=target_block_bytes,
                    block_batch_cap=block_batch)
    grid = (pl.cdiv(B, bm),)  # ragged last block handled by Pallas masking

    # Explicit scoped-VMEM budget: double-buffered in+out blocks + affine rows.
    block_bytes = bm * Np * itemsize
    est = 2 * (block_bytes + block_bytes) + 4 * (Np * 4)
    vmem_limit = min(max(int(est * 1.25) + (1 << 20), 16 << 20), 32 << 20)

    out = pl.pallas_call(
        functools.partial(_layernorm_kernel, n_feat=N, n_pad=Np, eps=float(eps)),
        out_shape=jax.ShapeDtypeStruct((B, Np), x.dtype),
        grid=grid,
        in_specs=[
            pl.BlockSpec((bm, Np), lambda i: (i, 0)),   # x rows (batch-tiled)
            pl.BlockSpec((1, Np), lambda i: (0, 0)),    # gamma (replicated)
            pl.BlockSpec((1, Np), lambda i: (0, 0)),    # beta  (replicated)
        ],
        out_specs=pl.BlockSpec((bm, Np), lambda i: (i, 0)),
        compiler_params=pltpu.CompilerParams(
            dimension_semantics=("parallel",),
            vmem_limit_bytes=vmem_limit,
        ),
    )(x2, g_full, b_full)

    if Np != N:
        out = out[:, :N]
    return out.reshape(orig_shape)


def reference_forward(x, gamma, beta, eps=LN_EPS):
    """Pure-JAX mirror of the PyTorch module."""
    B = x.shape[0]
    xf = x.reshape(B, -1)
    mean = jnp.mean(xf, axis=1)
    std = jnp.std(xf, axis=1, ddof=1)                 # unbiased, like torch.std
    bshape = (-1,) + (1,) * (x.ndim - 1)
    y = (x - mean.reshape(bshape)) / (std.reshape(bshape) + eps)
    cshape = (1, -1) + (1,) * (x.ndim - 2)
    return gamma.reshape(cshape) * y + beta.reshape(cshape)


if __name__ == "__main__":
    key = jax.random.PRNGKey(0)
    kx, kg, kx2 = jax.random.split(key, 3)

    # Small shapes consistent with the module: N = C*H*W = 1024 (lane-dense).
    B, C, H, W = 2, 4, 16, 16
    x = jax.random.normal(kx, (B, C, H, W), jnp.float32)
    gamma = jax.random.uniform(kg, (C,), jnp.float32)   # torch.Tensor(C).uniform_()
    beta = jnp.zeros((C,), jnp.float32)

    y = jax.block_until_ready(layer_norm_forward(x, gamma, beta))
    y_ref = reference_forward(x, gamma, beta)
    assert y.shape == x.shape
    assert jnp.allclose(y, y_ref, atol=1e-5, rtol=1e-4), float(jnp.max(jnp.abs(y - y_ref)))

    # Second check: batch not a multiple of the tile -> exercises the ragged
    # last block (no host-side pad / slice of the batch dimension).
    B2 = 25
    x_big = jax.random.normal(kx2, (B2, C, H, W), jnp.float32)
    y_big = jax.block_until_ready(layer_norm_forward(x_big, gamma, beta))
    y_big_ref = reference_forward(x_big, gamma, beta)
    assert y_big.shape == x_big.shape
    assert jnp.allclose(y_big, y_big_ref, atol=1e-5, rtol=1e-4), float(
        jnp.max(jnp.abs(y_big - y_big_ref)))

    print("KERNEL_OK")
</pallas_src>

<mosaic_0001>
module attributes {stable_mosaic.version = 11 : i64} {
  func.func @_layernorm_kernel(%arg0: i32, %arg1: memref<2x1024xf32, #tpu.memory_space<vmem>>, %arg2: memref<1x1024xf32, #tpu.memory_space<vmem>>, %arg3: memref<1x1024xf32, #tpu.memory_space<vmem>>, %arg4: memref<2x1024xf32, #tpu.memory_space<vmem>>) attributes {dimension_semantics = [#tpu.dimension_semantics<parallel>], iteration_bounds = array<i64: 1>, scalar_prefetch = 0 : i64, scratch_operands = 0 : i64, tpu.core_type = #tpu.core_type<tc>, window_params = [{transform_indices = @transform_0, window_bounds = array<i64: 2, 1024>}, {pipeline_mode = #tpu.pipeline_mode<synchronous>, transform_indices = @transform_1, window_bounds = array<i64: 1, 1024>}, {pipeline_mode = #tpu.pipeline_mode<synchronous>, transform_indices = @transform_2, window_bounds = array<i64: 1, 1024>}, {transform_indices = @transform_3, window_bounds = array<i64: 2, 1024>}]} {
    %c0 = arith.constant 0 : index
    %c0_0 = arith.constant 0 : index
    %0 = vector.load %arg1[%c0, %c0_0] : memref<2x1024xf32, #tpu.memory_space<vmem>>, vector<2x1024xf32>
    %cst = arith.constant dense<0.000000e+00> : vector<2xf32>
    %1 = vector.multi_reduction <add>, %0, %cst [1] : vector<2x1024xf32> to vector<2xf32>
    %2 = vector.shape_cast %1 : vector<2xf32> to vector<2x1xf32>
    %cst_1 = arith.constant 9.765625E-4 : f32
    %3 = vector.broadcast %cst_1 : f32 to vector<2x1xf32>
    %4 = arith.mulf %2, %3 : vector<2x1xf32>
    %5 = vector.broadcast %4 : vector<2x1xf32> to vector<2x1024xf32>
    %6 = arith.subf %0, %5 : vector<2x1024xf32>
    %7 = arith.mulf %6, %6 : vector<2x1024xf32>
    %cst_2 = arith.constant dense<0.000000e+00> : vector<2xf32>
    %8 = vector.multi_reduction <add>, %7, %cst_2 [1] : vector<2x1024xf32> to vector<2xf32>
    %9 = vector.shape_cast %8 : vector<2xf32> to vector<2x1xf32>
    %cst_3 = arith.constant 9.77517105E-4 : f32
    %10 = vector.broadcast %cst_3 : f32 to vector<2x1xf32>
    %11 = arith.mulf %9, %10 : vector<2x1xf32>
    %12 = math.sqrt %11 : vector<2x1xf32>
    %cst_4 = arith.constant 9.99999974E-6 : f32
    %13 = vector.broadcast %cst_4 : f32 to vector<2x1xf32>
    %14 = arith.addf %12, %13 : vector<2x1xf32>
    %cst_5 = arith.constant 1.000000e+00 : f32
    %15 = vector.broadcast %cst_5 : f32 to vector<2x1xf32>
    %16 = arith.divf %15, %14 : vector<2x1xf32>
    %17 = vector.broadcast %16 : vector<2x1xf32> to vector<2x1024xf32>
    %18 = arith.mulf %6, %17 : vector<2x1024xf32>
    %c0_6 = arith.constant 0 : index
    %c0_7 = arith.constant 0 : index
    %19 = vector.load %arg2[%c0_6, %c0_7] : memref<1x1024xf32, #tpu.memory_space<vmem>>, vector<1x1024xf32>
    %20 = vector.broadcast %19 : vector<1x1024xf32> to vector<2x1024xf32>
    %21 = arith.mulf %18, %20 : vector<2x1024xf32>
    %c0_8 = arith.constant 0 : index
    %c0_9 = arith.constant 0 : index
    %22 = vector.load %arg3[%c0_8, %c0_9] : memref<1x1024xf32, #tpu.memory_space<vmem>>, vector<1x1024xf32>
    %23 = vector.broadcast %22 : vector<1x1024xf32> to vector<2x1024xf32>
    %24 = arith.addf %21, %23 : vector<2x1024xf32>
    %c0_10 = arith.constant 0 : index
    %c0_11 = arith.constant 0 : index
    %25 = vector.load %arg4[%c0_10, %c0_11] : memref<2x1024xf32, #tpu.memory_space<vmem>>, vector<2x1024xf32>
    tpu.vector_store %arg4[%c0_10, %c0_11], %24 {strides = array<i32>} : memref<2x1024xf32, #tpu.memory_space<vmem>>, vector<2x1024xf32>,
    return
  }
  func.func @transform_0(%arg0: i32) -> (i32, i32) {
    %c0_i32 = arith.constant 0 : i32
    %c0_i32_0 = arith.constant 0 : i32
    return %arg0, %c0_i32 : i32, i32
  }
  func.func @transform_1(%arg0: i32) -> (i32, i32) {
    %c0_i32 = arith.constant 0 : i32
    %c0_i32_0 = arith.constant 0 : i32
    %c0_i32_1 = arith.constant 0 : i32
    return %c0_i32, %c0_i32_0 : i32, i32
  }
  func.func @transform_2(%arg0: i32) -> (i32, i32) {
    %c0_i32 = arith.constant 0 : i32
    %c0_i32_0 = arith.constant 0 : i32
    %c0_i32_1 = arith.constant 0 : i32
    return %c0_i32, %c0_i32_0 : i32, i32
  }
  func.func @transform_3(%arg0: i32) -> (i32, i32) {
    %c0_i32 = arith.constant 0 : i32
    %c0_i32_0 = arith.constant 0 : i32
    return %arg0, %c0_i32 : i32, i32
  }
}

</mosaic_0001>

<llo_original>
// kernel: tpu_custom_call.1
$region0: #{tpu_custom_call.1}
  #allocation0 [shape = 'u32[]', space=smem, size = 0x4, offset = 0x4, fixed_abs, tag = 'smem constant byte address 0x4 - core index']
  #allocation1 [shape = 'u32[144,128]{1,0:T(1,128)}', space=vmem, size = 0x12000, scoped, tag = 'internal scratch']
  %s0 = inlined_call_operand.hbm [shape: f32[2,1024], index: 0, kind: input, shape index: {}]
  %s1 = inlined_call_operand.hbm [shape: f32[1,1024], index: 1, kind: input, shape index: {}]
  %s2 = inlined_call_operand.hbm [shape: f32[1,1024], index: 2, kind: input, shape index: {}]
  %s3 = inlined_call_operand.hbm [shape: f32[2,1024], index: 3, kind: output, shape index: {}]
  %s4 = sld [smem:[#allocation0]]
  $region34: #{tpu_custom_call.1} parent=0
    _
  %s6 = ssub.s32 1, %s4
  %s7 = scalar_select 0, %s6, %s4
  $region1: #{tpu_custom_call.1} parent=0
    #allocation2 [shape = 'u8[8192]{0}', space=vmem, size = 0x2000, scoped, tag = 'input window, operand 0, single buffered']
    #allocation3 [shape = 's32[1]{0}', space=sflag, size = 0x4, scoped, tag = 'scoped memory for tpu_custom_call.1']
    #allocation4 [shape = 's32[1]{0}', space=sflag, size = 0x4, scoped, tag = 'scoped memory for tpu_custom_call.1']
    #allocation5 [shape = 'u8[4096]{0}', space=vmem, size = 0x1000, scoped, tag = 'input window, operand 1, single buffered']
    #allocation6 [shape = 's32[1]{0}', space=sflag, size = 0x4, scoped, tag = 'scoped memory for tpu_custom_call.1']
    #allocation7 [shape = 'u8[4096]{0}', space=vmem, size = 0x1000, scoped, tag = 'input window, operand 2, single buffered']
    #allocation8 [shape = 'u8[8192]{0}', space=vmem, size = 0x2000, scoped, tag = 'output window, operand 0, single buffered']
    %8 = vsyncpa [#allocation3], 0
    %9 = vsyncpa [#allocation6], 0
    %10 = vsyncpa [#allocation4], 0
    // Predicated region
    $region2: #{tpu_custom_call.1} parent=1 // pred_check
      _
    $region3: #{tpu_custom_call.1} parent=1 // pred_check_branch
      %12 = sbr.rel (0) target = $region5
    $region4: #{tpu_custom_call.1} parent=1 // pred_region
      %s14 = ssub.s32 256, 256
      %15 = vsyncadd [#allocation3], %s14
      %s17 = sshll.u32 [#allocation2], 4
      %s18 = int_to_ptr.vmem [resolvable:$true] %s17
      %20 = dma.hbm_to_vmem [thread:$0]  %s0, 256, %s18, [#allocation3]
    $region5: #{tpu_custom_call.1} parent=1 // pred_fallthru
      _
    // Predicated region
    $region6: #{tpu_custom_call.1} parent=1 // pred_check
      _
    $region7: #{tpu_custom_call.1} parent=1 // pred_check_branch
      %22 = sbr.rel (0) target = $region9
    $region8: #{tpu_custom_call.1} parent=1 // pred_region
      %s24 = ssub.s32 128, 128
      %25 = vsyncadd [#allocation6], %s24
      %s27 = sshll.u32 [#allocation5], 4
      %s28 = int_to_ptr.vmem [resolvable:$true] %s27
      %30 = dma.hbm_to_vmem [thread:$0]  %s1, 128, %s28, [#allocation6]
    $region9: #{tpu_custom_call.1} parent=1 // pred_fallthru
      _
    // Predicated region
    $region10: #{tpu_custom_call.1} parent=1 // pred_check
      _
    $region11: #{tpu_custom_call.1} parent=1 // pred_check_branch
      %32 = sbr.rel (0) target = $region13
    $region12: #{tpu_custom_call.1} parent=1 // pred_region
      %s34 = ssub.s32 128, 128
      %35 = vsyncadd [#allocation6], %s34
      %s37 = sshll.u32 [#allocation7], 4
      %s38 = int_to_ptr.vmem [resolvable:$true] %s37
      %40 = dma.hbm_to_vmem [thread:$0]  %s2, 128, %s38, [#allocation6]
    $region13: #{tpu_custom_call.1} parent=1 // pred_fallthru
      _
    // Predicated region
    $region14: #{tpu_custom_call.1} parent=1 // pred_check
      _
    $region15: #{tpu_custom_call.1} parent=1 // pred_check_branch
      %42 = sbr.rel (0) target = $region17
    $region16: #{tpu_custom_call.1} parent=1 // pred_region
      %43 = dma.done [#allocation3], 256
    $region17: #{tpu_custom_call.1} parent=1 // pred_fallthru
      _
    // Predicated region
    $region18: #{tpu_custom_call.1} parent=1 // pred_check
      _
    $region19: #{tpu_custom_call.1} parent=1 // pred_check_branch
      %45 = sbr.rel (0) target = $region21
    $region20: #{tpu_custom_call.1} parent=1 // pred_region
      %46 = dma.done [#allocation6], 128
    $region21: #{tpu_custom_call.1} parent=1 // pred_fallthru
      _
    // Predicated region
    $region22: #{tpu_custom_call.1} parent=1 // pred_check
      _
    $region23: #{tpu_custom_call.1} parent=1 // pred_check_branch
      %48 = sbr.rel (0) target = $region25
    $region24: #{tpu_custom_call.1} parent=1 // pred_region
      %49 = dma.done [#allocation6], 128
    $region25: #{tpu_custom_call.1} parent=1 // pred_fallthru
      _
    %v50 = vld [vmem:[#allocation2] sm:$0xff]
    %v51 = vld [vmem:[#allocation2 + $0x8] sm:$0xff]
    %v54 = vcombine.high %v50, %v50
    %v56 = vunpack.c.l.s4 1983009808
    %v57 = vunpack.c.0.s8 %v56
    %v58 = vlaneseq
    %v59 = vshrl.u32 %v58, 7
    %v60 = vsub.s32 %v57, %v59
    %v61 = vrot.slane %v50, %v60
    %v63 = vunpack.c.l.s4 1983009808
    %v64 = vunpack.c.0.s8 %v63
    %v65 = vlaneseq
    %v66 = vshrl.u32 %v65, 7
    %v67 = vsub.s32 %v64, %v66
    %v68 = vrot.slane %v54, %v67
    %v69 = vcombine.high %v61, %v61
    %v70 = vcombine.high %v68, %v68
    %v71 = vcombine.high %v51, %v51
    %v73 = vunpack.c.l.s4 1983009808
    %v74 = vunpack.c.0.s8 %v73
    %v75 = vlaneseq
    %v76 = vshrl.u32 %v75, 7
    %v77 = vsub.s32 %v74, %v76
    %v78 = vrot.slane %v51, %v77
    %v80 = vunpack.c.l.s4 1983009808
    %v81 = vunpack.c.0.s8 %v80
    %v82 = vlaneseq
    %v83 = vshrl.u32 %v82, 7
    %v84 = vsub.s32 %v81, %v83
    %v85 = vrot.slane %v71, %v84
    %v86 = vcombine.high %v78, %v78
    %v87 = vcombine.high %v85, %v85
    %vm96 = vcmask 1041408
    %v97 = vsel %vm96, %v61, 0.0
    %v98 = vsel %vm96, %v69, 0.0
    %v99 = vadd.f32 %v97, %v98
    %v100 = vsel %vm96, %v68, 0.0
    %v101 = vadd.f32 %v99, %v100
    %v102 = vsel %vm96, %v70, 0.0
    %v103 = vadd.f32 %v101, %v102
    %v104 = vsel %vm96, %v78, 0.0
    %v105 = vadd.f32 %v103, %v104
    %v106 = vsel %vm96, %v86, 0.0
    %v107 = vadd.f32 %v105, %v106
    %v108 = vsel %vm96, %v85, 0.0
    %v109 = vadd.f32 %v107, %v108
    %v110 = vsel %vm96, %v87, 0.0
    %v111 = vadd.f32 %v109, %v110
    %112 = vadd.xlane.f32.xlu0 %v111
    %v113 = vpop.xlane.xlu0 %112
    %v114 = vmul.f32 %v113, 0.0009765625
    %v117 = vunpack.c.l.s4 269488144
    %v118 = vunpack.c.0.s8 %v117
    %v119 = vlaneseq
    %v120 = vshrl.u32 %v119, 7
    %v121 = vsub.s32 %v118, %v120
    %v122 = vrot.slane %v114, %v121
    %v124 = vsub.f32 %v50, %v122
    %v125 = vsub.f32 %v51, %v122
    %v126 = vmul.f32 %v124, %v124
    %v127 = vmul.f32 %v125, %v125
    %v130 = vcombine.high %v126, %v126
    %v132 = vunpack.c.l.s4 1983009808
    %v133 = vunpack.c.0.s8 %v132
    %v134 = vlaneseq
    %v135 = vshrl.u32 %v134, 7
    %v136 = vsub.s32 %v133, %v135
    %v137 = vrot.slane %v126, %v136
    %v139 = vunpack.c.l.s4 1983009808
    %v140 = vunpack.c.0.s8 %v139
    %v141 = vlaneseq
    %v142 = vshrl.u32 %v141, 7
    %v143 = vsub.s32 %v140, %v142
    %v144 = vrot.slane %v130, %v143
    %v145 = vcombine.high %v137, %v137
    %v146 = vcombine.high %v144, %v144
    %v147 = vcombine.high %v127, %v127
    %v149 = vunpack.c.l.s4 1983009808
    %v150 = vunpack.c.0.s8 %v149
    %v151 = vlaneseq
    %v152 = vshrl.u32 %v151, 7
    %v153 = vsub.s32 %v150, %v152
    %v154 = vrot.slane %v127, %v153
    %v156 = vunpack.c.l.s4 1983009808
    %v157 = vunpack.c.0.s8 %v156
    %v158 = vlaneseq
    %v159 = vshrl.u32 %v158, 7
    %v160 = vsub.s32 %v157, %v159
    %v161 = vrot.slane %v147, %v160
    %v162 = vcombine.high %v154, %v154
    %v163 = vcombine.high %v161, %v161
    %v172 = vsel %vm96, %v137, 0.0
    %v173 = vsel %vm96, %v145, 0.0
    %v174 = vadd.f32 %v172, %v173
    %v175 = vsel %vm96, %v144, 0.0
    %v176 = vadd.f32 %v174, %v175
    %v177 = vsel %vm96, %v146, 0.0
    %v178 = vadd.f32 %v176, %v177
    %v179 = vsel %vm96, %v154, 0.0
    %v180 = vadd.f32 %v178, %v179
    %v181 = vsel %vm96, %v162, 0.0
    %v182 = vadd.f32 %v180, %v181
    %v183 = vsel %vm96, %v161, 0.0
    %v184 = vadd.f32 %v182, %v183
    %v185 = vsel %vm96, %v163, 0.0
    %v186 = vadd.f32 %v184, %v185
    %187 = vadd.xlane.f32.xlu0 %v186
    %v188 = vpop.xlane.xlu0 %187
    %v189 = vmul.f32 %v188, 0.0009775171
    %v190 = vrsqrt.pop %v189
    %v191 = vmul.f32 %v189, %v190
    %vm192 = vcmp.eq.f32.partialorder %v189, inf
    %v193 = vsel %vm192, %v189, %v191
    %vm194 = vcmp.eq.f32.partialorder %v189, 0.0
    %v195 = vand.u32 %v189, 2147483648
    %v196 = vsel %vm194, %v195, %v193
    %v197 = vadd.f32 %v196, 1e-05
    %v198 = vrcp.pop %v197
    %v199 = vmul.f32 1.0, %v198
    %v202 = vunpack.c.l.s4 269488144
    %v203 = vunpack.c.0.s8 %v202
    %v204 = vlaneseq
    %v205 = vshrl.u32 %v204, 7
    %v206 = vsub.s32 %v203, %v205
    %v207 = vrot.slane %v199, %v206
    %v209 = vmul.f32 %v124, %v207
    %v210 = vmul.f32 %v125, %v207
    %v211 = vld [vmem:[#allocation5] sm:$0xff]
    %v213 = vlaneseq
    %v214 = vshrl.u32 %v213, 7
    %v215 = vsub.s32 0, %v214
    %v216 = vrot.slane %v211, %v215
    %v217 = vlaneseq
    %v218 = vshrl.u32 %v217, 7
    %v219 = vsub.s32 1, %v218
    %v220 = vrot.slane %v211, %v219
    %v221 = vlaneseq
    %v222 = vshrl.u32 %v221, 7
    %v223 = vsub.s32 2, %v222
    %v224 = vrot.slane %v211, %v223
    %v225 = vlaneseq
    %v226 = vshrl.u32 %v225, 7
    %v227 = vsub.s32 3, %v226
    %v228 = vrot.slane %v211, %v227
    %v229 = vlaneseq
    %v230 = vshrl.u32 %v229, 7
    %v231 = vsub.s32 4, %v230
    %v232 = vrot.slane %v211, %v231
    %v233 = vlaneseq
    %v234 = vshrl.u32 %v233, 7
    %v235 = vsub.s32 5, %v234
    %v236 = vrot.slane %v211, %v235
    %v237 = vlaneseq
    %v238 = vshrl.u32 %v237, 7
    %v239 = vsub.s32 6, %v238
    %v240 = vrot.slane %v211, %v239
    %v241 = vlaneseq
    %v242 = vshrl.u32 %v241, 7
    %v243 = vsub.s32 7, %v242
    %v244 = vrot.slane %v211, %v243
    %v245 = vcombine.low %v216, %v220
    %v246 = vcombine.low %v224, %v228
    %v248 = vunpack.c.l.s4 1983009808
    %v249 = vunpack.c.0.s8 %v248
    %v250 = vlaneseq
    %v251 = vshrl.u32 %v250, 7
    %v252 = vsub.s32 %v249, %v251
    %v253 = vrot.slane %v245, %v252
    %v255 = vunpack.c.l.s4 1983009808
    %v256 = vunpack.c.0.s8 %v255
    %v257 = vlaneseq
    %v258 = vshrl.u32 %v257, 7
    %v259 = vsub.s32 %v256, %v258
    %v260 = vrot.slane %v246, %v259
    %v261 = vcombine.low %v253, %v260
    %v262 = vcombine.low %v232, %v236
    %v263 = vcombine.low %v240, %v244
    %v265 = vunpack.c.l.s4 1983009808
    %v266 = vunpack.c.0.s8 %v265
    %v267 = vlaneseq
    %v268 = vshrl.u32 %v267, 7
    %v269 = vsub.s32 %v266, %v268
    %v270 = vrot.slane %v262, %v269
    %v272 = vunpack.c.l.s4 1983009808
    %v273 = vunpack.c.0.s8 %v272
    %v274 = vlaneseq
    %v275 = vshrl.u32 %v274, 7
    %v276 = vsub.s32 %v273, %v275
    %v277 = vrot.slane %v263, %v276
    %v278 = vcombine.low %v270, %v277
    %v281 = vmul.f32 %v209, %v261
    %v282 = vmul.f32 %v210, %v278
    %v283 = vld [vmem:[#allocation7] sm:$0xff]
    %v285 = vlaneseq
    %v286 = vshrl.u32 %v285, 7
    %v287 = vsub.s32 0, %v286
    %v288 = vrot.slane %v283, %v287
    %v289 = vlaneseq
    %v290 = vshrl.u32 %v289, 7
    %v291 = vsub.s32 1, %v290
    %v292 = vrot.slane %v283, %v291
    %v293 = vlaneseq
    %v294 = vshrl.u32 %v293, 7
    %v295 = vsub.s32 2, %v294
    %v296 = vrot.slane %v283, %v295
    %v297 = vlaneseq
    %v298 = vshrl.u32 %v297, 7
    %v299 = vsub.s32 3, %v298
    %v300 = vrot.slane %v283, %v299
    %v301 = vlaneseq
    %v302 = vshrl.u32 %v301, 7
    %v303 = vsub.s32 4, %v302
    %v304 = vrot.slane %v283, %v303
    %v305 = vlaneseq
    %v306 = vshrl.u32 %v305, 7
    %v307 = vsub.s32 5, %v306
    %v308 = vrot.slane %v283, %v307
    %v309 = vlaneseq
    %v310 = vshrl.u32 %v309, 7
    %v311 = vsub.s32 6, %v310
    %v312 = vrot.slane %v283, %v311
    %v313 = vlaneseq
    %v314 = vshrl.u32 %v313, 7
    %v315 = vsub.s32 7, %v314
    %v316 = vrot.slane %v283, %v315
    %v317 = vcombine.low %v288, %v292
    %v318 = vcombine.low %v296, %v300
    %v320 = vunpack.c.l.s4 1983009808
    %v321 = vunpack.c.0.s8 %v320
    %v322 = vlaneseq
    %v323 = vshrl.u32 %v322, 7
    %v324 = vsub.s32 %v321, %v323
    %v325 = vrot.slane %v317, %v324
    %v327 = vunpack.c.l.s4 1983009808
    %v328 = vunpack.c.0.s8 %v327
    %v329 = vlaneseq
    %v330 = vshrl.u32 %v329, 7
    %v331 = vsub.s32 %v328, %v330
    %v332 = vrot.slane %v318, %v331
    %v333 = vcombine.low %v325, %v332
    %v334 = vcombine.low %v304, %v308
    %v335 = vcombine.low %v312, %v316
    %v337 = vunpack.c.l.s4 1983009808
    %v338 = vunpack.c.0.s8 %v337
    %v339 = vlaneseq
    %v340 = vshrl.u32 %v339, 7
    %v341 = vsub.s32 %v338, %v340
    %v342 = vrot.slane %v334, %v341
    %v344 = vunpack.c.l.s4 1983009808
    %v345 = vunpack.c.0.s8 %v344
    %v346 = vlaneseq
    %v347 = vshrl.u32 %v346, 7
    %v348 = vsub.s32 %v345, %v347
    %v349 = vrot.slane %v335, %v348
    %v350 = vcombine.low %v342, %v349
    %v353 = vadd.f32 %v281, %v333
    %v354 = vadd.f32 %v282, %v350
    %355 = vst [vmem:[#allocation8] sm:$0xff] %v353
    %356 = vst [vmem:[#allocation8 + $0x8] sm:$0xff] %v354
    // Predicated region
    $region26: #{tpu_custom_call.1} parent=1 // pred_check
      _
    $region27: #{tpu_custom_call.1} parent=1 // pred_check_branch
      %358 = sbr.rel (0) target = $region29
    $region28: #{tpu_custom_call.1} parent=1 // pred_region
      %s360 = ssub.s32 256, 256
      %361 = vsyncadd [#allocation4], %s360
      %s363 = sshll.u32 [#allocation8], 4
      %s364 = int_to_ptr.vmem [resolvable:$true] %s363
      %366 = dma.vmem_to_hbm [thread:$0]  %s364, 256, %s3, [#allocation4]
    $region29: #{tpu_custom_call.1} parent=1 // pred_fallthru
      _
    // Predicated region
    $region30: #{tpu_custom_call.1} parent=1 // pred_check
      _
    $region31: #{tpu_custom_call.1} parent=1 // pred_check_branch
      %368 = sbr.rel (0) target = $region33
    $region32: #{tpu_custom_call.1} parent=1 // pred_region
      %369 = dma.done [#allocation4], 256
    $region33: #{tpu_custom_call.1} parent=1 // pred_fallthru
      _
    %370 = vsyncpa [#allocation3], 1
    %371 = vsyncpa [#allocation6], 1
    %372 = vsyncpa [#allocation4], 1

</llo_original>
